<compile_context>
chip_gen: v6e
topology: v6e:2x2x1
jax: 0.10.0
libtpu: 0.0.40
codegen_flags: <defaults>
</compile_context>

<pallas_src>
import jax
import jax.numpy as jnp
from jax.experimental import pallas as pl
from jax.experimental.pallas import tpu as pltpu


def _round_up(x, m):
    return (x + m - 1) // m * m


def _cdiv(a, b):
    return -(-a // b)


def _make_dml_kernel(B, TB, needs_row_mask):
    def kernel(out1_ref, out2_ref, partial_ref):
        x1r = out1_ref[...]                      # (TB, C) native dtype
        x2r = out2_ref[...]

        # Row max in native dtype (exact for bf16), everything else in f32.
        m1 = jnp.max(x1r, axis=1, keepdims=True).astype(jnp.float32)
        m2 = jnp.max(x2r, axis=1, keepdims=True).astype(jnp.float32)

        x1 = x1r.astype(jnp.float32)
        x2 = x2r.astype(jnp.float32)
        s1 = x1 - m1
        s2 = x2 - m2

        e2 = jnp.exp(s2)
        z1 = jnp.sum(jnp.exp(s1), axis=1, keepdims=True)      # (TB, 1)
        z2 = jnp.sum(e2, axis=1, keepdims=True)                # (TB, 1)

        # Lane-axis reduce first; padded/underflowed probabilities contribute
        # exactly 0 because e2 underflows to 0 and s1,s2 are finite.
        num = jnp.sum(e2 * (s2 - s1), axis=1, keepdims=True)   # (TB, 1)

        # Per-row KL; divide goes to the EUP slot.
        row_kl = num * pl.reciprocal(z2, approx=False) + (jnp.log(z1) - jnp.log(z2))

        if needs_row_mask:
            # Ragged last block: zero the out-of-range rows' contribution
            # (whatever garbage was loaded there never reaches the result).
            row = jax.lax.broadcasted_iota(jnp.int32, (TB, 1), 0)
            valid = (pl.program_id(0) * TB + row) < B
            row_kl = jnp.where(valid, row_kl, 0.0)

        partial_ref[0, 0] = jnp.sum(row_kl)

    return kernel


def dml_loss(out1: jax.Array, out2: jax.Array, *, block_rows: int | None = None) -> jax.Array:
    """KL(softmax(out2, 1) || softmax(out1, 1)) with 'batchmean' reduction."""
    assert out1.shape == out2.shape and out1.ndim == 2
    B, C = out1.shape
    itemsize = jnp.dtype(out1.dtype).itemsize

    # Sublane packing for the input dtype (bf16 packs 16 rows/vreg, 8-bit 32).
    sub = {1: 32, 2: 16}.get(itemsize, 8)

    # VMEM budget per grid step: 2 inputs x 2 pipeline buffers in the native
    # dtype plus ~6 live f32 (TB, C) intermediates inside the body.  12 MiB
    # fits v5e's 16 MiB scoped default and leaves headroom on v7x (64 MiB).
    budget_bytes = 12 * 1024 * 1024
    per_row_bytes = C * (4 * itemsize + 6 * 4)
    tb_cap = max(sub, min(1024, budget_bytes // per_row_bytes) // sub * sub)
    if block_rows is not None:
        tb_cap = max(sub, min(tb_cap, _round_up(block_rows, sub)))

    if B <= tb_cap:
        if B >= 2 * sub:
            # Split into (at least) two blocks so both v7x TensorCores get a
            # batch tile under dimension_semantics=("parallel",).
            TB = _round_up(_cdiv(B, 2), sub)
        else:
            TB = B          # single block; block dim == full array dim is legal
    else:
        TB = tb_cap

    num_blocks = _cdiv(B, TB)
    needs_row_mask = (num_blocks * TB) != B

    kernel = _make_dml_kernel(B, TB, needs_row_mask)

    partials = pl.pallas_call(
        kernel,
        out_shape=jax.ShapeDtypeStruct((num_blocks, 1), jnp.float32),
        grid=(num_blocks,),
        in_specs=[
            pl.BlockSpec((TB, C), lambda i: (i, 0)),
            pl.BlockSpec((TB, C), lambda i: (i, 0)),
        ],
        out_specs=pl.BlockSpec((1, 1), lambda i: (i, 0),
                               memory_space=pltpu.SMEM),
        compiler_params=pltpu.CompilerParams(
            dimension_semantics=("parallel",),
            vmem_limit_bytes=32 * 1024 * 1024,
        ),
        cost_estimate=pl.CostEstimate(
            flops=8 * B * C,
            transcendentals=2 * B * C + 3 * B,
            bytes_accessed=2 * B * C * itemsize + num_blocks * 4,
        ),
    )(out1, out2)

    # 'batchmean': total sum divided by the batch size.
    return (jnp.sum(partials) / jnp.float32(B)).astype(jnp.float32)


def _dml_loss_ref(out1, out2):
    """Pure-JAX reference (matches F.kl_div(log_softmax, softmax, 'batchmean'))."""
    log_p1 = jax.nn.log_softmax(out1.astype(jnp.float32), axis=1)
    p2 = jax.nn.softmax(out2.astype(jnp.float32), axis=1)
    log_p2 = jax.nn.log_softmax(out2.astype(jnp.float32), axis=1)
    kl = jnp.where(p2 > 0.0, p2 * (log_p2 - log_p1), 0.0)
    return jnp.sum(kl) / out1.shape[0]


if __name__ == "__main__":
    key = jax.random.PRNGKey(0)
    k1, k2, k3, k4 = jax.random.split(key, 4)

    # Case 1: small shapes consistent with the module (two sets of logits).
    B, C = 8, 32
    out1 = jax.random.normal(k1, (B, C), dtype=jnp.float32)
    out2 = jax.random.normal(k2, (B, C), dtype=jnp.float32)
    loss = jax.block_until_ready(dml_loss(out1, out2))
    ref = jax.block_until_ready(_dml_loss_ref(out1, out2))
    assert jnp.allclose(loss, ref, rtol=2e-5, atol=1e-6), (loss, ref)

    # Case 2: multi-block grid, ragged last block (row masking), bf16 path.
    B2, C2 = 50, 200
    o1 = jax.random.normal(k3, (B2, C2), dtype=jnp.float32).astype(jnp.bfloat16)
    o2 = jax.random.normal(k4, (B2, C2), dtype=jnp.float32).astype(jnp.bfloat16)
    loss2 = jax.block_until_ready(dml_loss(o1, o2, block_rows=16))
    ref2 = jax.block_until_ready(_dml_loss_ref(o1, o2))
    assert jnp.allclose(loss2, ref2, rtol=1e-4, atol=1e-5), (loss2, ref2)

    print("KERNEL_OK")
</pallas_src>

<mosaic_0001>
module attributes {stable_mosaic.version = 11 : i64} {
  func.func @kernel(%arg0: i32, %arg1: memref<8x32xf32, #tpu.memory_space<vmem>>, %arg2: memref<8x32xf32, #tpu.memory_space<vmem>>, %arg3: memref<1x1xf32, #tpu.memory_space<smem>>) attributes {dimension_semantics = [#tpu.dimension_semantics<parallel>], iteration_bounds = array<i64: 1>, scalar_prefetch = 0 : i64, scratch_operands = 0 : i64, tpu.core_type = #tpu.core_type<tc>, window_params = [{transform_indices = @transform_0, window_bounds = array<i64: 8, 32>}, {transform_indices = @transform_1, window_bounds = array<i64: 8, 32>}, {transform_indices = @transform_2, window_bounds = array<i64: 1, 1>}]} {
    %c0 = arith.constant 0 : index
    %c0_0 = arith.constant 0 : index
    %0 = vector.load %arg1[%c0, %c0_0] : memref<8x32xf32, #tpu.memory_space<vmem>>, vector<8x32xf32>
    %c0_1 = arith.constant 0 : index
    %c0_2 = arith.constant 0 : index
    %1 = vector.load %arg2[%c0_1, %c0_2] : memref<8x32xf32, #tpu.memory_space<vmem>>, vector<8x32xf32>
    %cst = arith.constant dense<0xFF800000> : vector<8xf32>
    %2 = vector.multi_reduction <maximumf>, %0, %cst [1] : vector<8x32xf32> to vector<8xf32>
    %3 = vector.shape_cast %2 : vector<8xf32> to vector<8x1xf32>
    %cst_3 = arith.constant dense<0xFF800000> : vector<8xf32>
    %4 = vector.multi_reduction <maximumf>, %1, %cst_3 [1] : vector<8x32xf32> to vector<8xf32>
    %5 = vector.shape_cast %4 : vector<8xf32> to vector<8x1xf32>
    %6 = vector.broadcast %3 : vector<8x1xf32> to vector<8x32xf32>
    %7 = arith.subf %0, %6 : vector<8x32xf32>
    %8 = vector.broadcast %5 : vector<8x1xf32> to vector<8x32xf32>
    %9 = arith.subf %1, %8 : vector<8x32xf32>
    %10 = math.exp %9 : vector<8x32xf32>
    %11 = math.exp %7 : vector<8x32xf32>
    %cst_4 = arith.constant dense<0.000000e+00> : vector<8xf32>
    %12 = vector.multi_reduction <add>, %11, %cst_4 [1] : vector<8x32xf32> to vector<8xf32>
    %13 = vector.shape_cast %12 : vector<8xf32> to vector<8x1xf32>
    %cst_5 = arith.constant dense<0.000000e+00> : vector<8xf32>
    %14 = vector.multi_reduction <add>, %10, %cst_5 [1] : vector<8x32xf32> to vector<8xf32>
    %15 = vector.shape_cast %14 : vector<8xf32> to vector<8x1xf32>
    %16 = arith.subf %9, %7 : vector<8x32xf32>
    %17 = arith.mulf %10, %16 : vector<8x32xf32>
    %cst_6 = arith.constant dense<0.000000e+00> : vector<8xf32>
    %18 = vector.multi_reduction <add>, %17, %cst_6 [1] : vector<8x32xf32> to vector<8xf32>
    %19 = vector.shape_cast %18 : vector<8xf32> to vector<8x1xf32>
    %20 = tpu.reciprocal %15 : vector<8x1xf32> -> vector<8x1xf32>
    %21 = arith.mulf %19, %20 : vector<8x1xf32>
    %22 = math.log %13 : vector<8x1xf32>
    %23 = math.log %15 : vector<8x1xf32>
    %24 = arith.subf %22, %23 : vector<8x1xf32>
    %25 = arith.addf %21, %24 : vector<8x1xf32>
    %26 = vector.shape_cast %25 : vector<8x1xf32> to vector<1x8x1xf32>
    %cst_7 = arith.constant dense<0.000000e+00> : vector<1xf32>
    %27 = vector.multi_reduction <add>, %26, %cst_7 [1, 2] : vector<1x8x1xf32> to vector<1xf32>
    %28 = vector.shape_cast %27 : vector<1xf32> to vector<1x1x1xf32>
    %29 = vector.extract %28[0, 0, 0] : f32 from vector<1x1x1xf32>
    %c0_8 = arith.constant 0 : index
    %c0_9 = arith.constant 0 : index
    %30 = memref.load %arg3[%c0_8, %c0_9] : memref<1x1xf32, #tpu.memory_space<smem>>
    memref.store %29, %arg3[%c0_8, %c0_9] : memref<1x1xf32, #tpu.memory_space<smem>>
    return
  }
  func.func @transform_0(%arg0: i32) -> (i32, i32) {
    %c0_i32 = arith.constant 0 : i32
    %c0_i32_0 = arith.constant 0 : i32
    return %arg0, %c0_i32 : i32, i32
  }
  func.func @transform_1(%arg0: i32) -> (i32, i32) {
    %c0_i32 = arith.constant 0 : i32
    %c0_i32_0 = arith.constant 0 : i32
    return %arg0, %c0_i32 : i32, i32
  }
  func.func @transform_2(%arg0: i32) -> (i32, i32) {
    %c0_i32 = arith.constant 0 : i32
    %c0_i32_0 = arith.constant 0 : i32
    return %arg0, %c0_i32 : i32, i32
  }
}

</mosaic_0001>

<llo_original>
// kernel: tpu_custom_call.1
$region0: #{tpu_custom_call.1}
  #allocation0 [shape = 'u32[]', space=smem, size = 0x4, offset = 0x4, fixed_abs, tag = 'smem constant byte address 0x4 - core index']
  #allocation1 [shape = 'u32[144,128]{1,0:T(1,128)}', space=vmem, size = 0x12000, scoped, tag = 'internal scratch']
  %s0 = inlined_call_operand.hbm [shape: f32[8,32], index: 0, kind: input, shape index: {}]
  %s1 = inlined_call_operand.hbm [shape: f32[8,32], index: 1, kind: input, shape index: {}]
  %s2 = inlined_call_operand.hbm [shape: f32[1,1], index: 2, kind: output, shape index: {}]
  %s3 = sld [smem:[#allocation0]]
  $region26: #{tpu_custom_call.1} parent=0
    _
  %s5 = ssub.s32 1, %s3
  %s6 = scalar_select 0, %s5, %s3
  $region1: #{tpu_custom_call.1} parent=0
    #allocation2 [shape = 'u8[4096]{0}', space=vmem, size = 0x1000, scoped, tag = 'input window, operand 0, single buffered']
    #allocation3 [shape = 's32[1]{0}', space=sflag, size = 0x4, scoped, tag = 'scoped memory for tpu_custom_call.1']
    #allocation4 [shape = 's32[1]{0}', space=sflag, size = 0x4, scoped, tag = 'scoped memory for tpu_custom_call.1']
    #allocation5 [shape = 'u8[4096]{0}', space=vmem, size = 0x1000, scoped, tag = 'input window, operand 1, single buffered']
    #allocation6 [shape = 's32[1]{0}', space=sflag, size = 0x4, scoped, tag = 'scoped memory for tpu_custom_call.1']
    #allocation7 [shape = 'u8[512]{0}', space=smem, size = 0x200, scoped, tag = 'output window, operand 0, single buffered']
    %7 = vsyncpa [#allocation3], 0
    %8 = vsyncpa [#allocation6], 0
    %9 = vsyncpa [#allocation4], 0
    // Predicated region
    $region2: #{tpu_custom_call.1} parent=1 // pred_check
      _
    $region3: #{tpu_custom_call.1} parent=1 // pred_check_branch
      %11 = sbr.rel (0) target = $region5
    $region4: #{tpu_custom_call.1} parent=1 // pred_region
      %s13 = ssub.s32 128, 128
      %14 = vsyncadd [#allocation3], %s13
      %s16 = sshll.u32 [#allocation2], 4
      %s17 = int_to_ptr.vmem [resolvable:$true] %s16
      %19 = dma.hbm_to_vmem [thread:$0]  %s0, 128, %s17, [#allocation3]
    $region5: #{tpu_custom_call.1} parent=1 // pred_fallthru
      _
    // Predicated region
    $region6: #{tpu_custom_call.1} parent=1 // pred_check
      _
    $region7: #{tpu_custom_call.1} parent=1 // pred_check_branch
      %21 = sbr.rel (0) target = $region9
    $region8: #{tpu_custom_call.1} parent=1 // pred_region
      %s23 = ssub.s32 128, 128
      %24 = vsyncadd [#allocation6], %s23
      %s26 = sshll.u32 [#allocation5], 4
      %s27 = int_to_ptr.vmem [resolvable:$true] %s26
      %29 = dma.hbm_to_vmem [thread:$0]  %s1, 128, %s27, [#allocation6]
    $region9: #{tpu_custom_call.1} parent=1 // pred_fallthru
      _
    // Predicated region
    $region10: #{tpu_custom_call.1} parent=1 // pred_check
      _
    $region11: #{tpu_custom_call.1} parent=1 // pred_check_branch
      %31 = sbr.rel (0) target = $region13
    $region12: #{tpu_custom_call.1} parent=1 // pred_region
      %32 = dma.done [#allocation3], 128
    $region13: #{tpu_custom_call.1} parent=1 // pred_fallthru
      _
    // Predicated region
    $region14: #{tpu_custom_call.1} parent=1 // pred_check
      _
    $region15: #{tpu_custom_call.1} parent=1 // pred_check_branch
      %34 = sbr.rel (0) target = $region17
    $region16: #{tpu_custom_call.1} parent=1 // pred_region
      %35 = dma.done [#allocation6], 128
    $region17: #{tpu_custom_call.1} parent=1 // pred_fallthru
      _
    %v36 = vld [vmem:[#allocation2] sm:$0xff]
    %v37 = vld [vmem:[#allocation5] sm:$0xff]
    %vm38 = vcmask 261120
    %v39 = vsel %vm38, %v36, -inf
    %40 = vmax.xlane.f32.xlu0 %v39
    %v41 = vpop.xlane.xlu0 %40
    %v42 = vsel %vm38, %v37, -inf
    %43 = vmax.xlane.f32.xlu0 %v42
    %v44 = vpop.xlane.xlu0 %43
    %v45 = vsub.f32 %v36, %v41
    %v46 = vsub.f32 %v37, %v44
    %v47 = vmul.f32 %v46, 1.442695
    %v48 = vpow.pop %v47
    %v49 = vmul.f32 %v45, 1.442695
    %v50 = vpow.pop %v49
    %v51 = vsel %vm38, %v50, 0.0
    %52 = vadd.xlane.f32.xlu0 %v51
    %v53 = vpop.xlane.xlu0 %52
    %v54 = vsel %vm38, %v48, 0.0
    %55 = vadd.xlane.f32.xlu0 %v54
    %v56 = vpop.xlane.xlu0 %55
    %v57 = vsub.f32 %v46, %v45
    %v58 = vmul.f32 %v48, %v57
    %v59 = vsel %vm38, %v58, 0.0
    %60 = vadd.xlane.f32.xlu0 %v59
    %v61 = vpop.xlane.xlu0 %60
    %v62 = vrcp.pop %v56
    %v63 = vmul.f32 %v61, %v62
    %v64 = vlog2.pop %v53
    %v65 = vmul.f32 %v64, 0.6931472
    %v66 = vlog2.pop %v56
    %v67 = vmul.f32 %v66, 0.6931472
    %v68 = vsub.f32 %v65, %v67
    %v69 = vadd.f32 %v63, %v68
    %vm70 = vcmask 7168
    %v71 = vsel %vm70, %v69, 0.0
    %72 = vadd.xlane.f32.xlu0 %v71
    %v73 = vpop.xlane.xlu0 %72
    %v74 = vrot.slane %v73, 4
    %v75 = vadd.f32 %v73, %v74
    %v76 = vrot.slane %v75, 2
    %v77 = vadd.f32 %v75, %v76
    %v78 = vrot.slane %v77, 1
    %v79 = vadd.f32 %v77, %v78
    %s80 = vtos %v79
    %s81 = scalar_lea.smem [#allocation7], 0
    %82 = sst [smem:[%s81]] %s80
    // Predicated region
    $region18: #{tpu_custom_call.1} parent=1 // pred_check
      _
    $region19: #{tpu_custom_call.1} parent=1 // pred_check_branch
      %84 = sbr.rel (0) target = $region21
    $region20: #{tpu_custom_call.1} parent=1 // pred_region
      %s86 = ssub.s32 16, 16
      %87 = vsyncadd [#allocation4], %s86
      %90 = dma.smem_to_hbm [#allocation7], 16, %s2, [#allocation4]
    $region21: #{tpu_custom_call.1} parent=1 // pred_fallthru
      _
    // Predicated region
    $region22: #{tpu_custom_call.1} parent=1 // pred_check
      _
    $region23: #{tpu_custom_call.1} parent=1 // pred_check_branch
      %92 = sbr.rel (0) target = $region25
    $region24: #{tpu_custom_call.1} parent=1 // pred_region
      %93 = dma.done [#allocation4], 16
    $region25: #{tpu_custom_call.1} parent=1 // pred_fallthru
      _
    %94 = sfence
    %95 = vsyncpa [#allocation3], 1
    %96 = vsyncpa [#allocation6], 1
    %97 = vsyncpa [#allocation4], 1

</llo_original>
